<compile_context>
chip_gen: v6e
topology: v6e:2x2x1
jax: 0.10.0
libtpu: 0.0.40
codegen_flags: <defaults>
</compile_context>

<pallas_src>
import jax
import jax.numpy as jnp
from jax import lax
from jax.experimental import pallas as pl
from jax.experimental.pallas import tpu as pltpu

KW = 4            # kernel_size = 4
PADW = 2          # int(ceil((4-1)/2)) = 2
LRELU_SLOPE = 0.2
BN_EPS = 1e-5

TM_TARGET = 1024          # rows per M tile
TK_TARGET = 1024          # K tile upper bound
VMEM_LIMIT = 32 * 1024 * 1024   # raise v5e's 16 MiB default; == v6e/v7x default


def _round_up(x, m):
    return (x + m - 1) // m * m


# ---------------------------------------------------------------------------
# Pallas kernels
# ---------------------------------------------------------------------------
def _make_matmul_kernel(use_bias, compute_stats, act):
    """Tiled conv-as-matmul with f32 accumulator.  At the last K step the
    epilogue optionally adds bias, emits per-channel partial (sum, sumsq)
    for BatchNorm, and applies LeakyReLU / Sigmoid (non-BN layers only)."""

    def kernel(*refs):
        x_ref, w_ref = refs[0], refs[1]
        idx = 2
        b_ref = None
        if use_bias:
            b_ref = refs[idx]; idx += 1
        y_ref = refs[idx]; idx += 1
        stats_ref = None
        if compute_stats:
            stats_ref = refs[idx]; idx += 1
        acc_ref = refs[idx]

        @pl.when(pl.program_id(1) == 0)
        def _():
            acc_ref[...] = jnp.zeros_like(acc_ref)

        acc_ref[...] += jnp.dot(x_ref[...], w_ref[...],
                                preferred_element_type=jnp.float32)

        @pl.when(pl.program_id(1) == pl.num_programs(1) - 1)
        def _():
            y = acc_ref[...]
            if use_bias:
                y = y + b_ref[...]
            if compute_stats:
                # Padded rows/cols of xcol are exactly zero and BN layers have no
                # bias, so padded positions contribute exactly 0 to the f32
                # partials; the divide by the true M happens in the wrapper.
                s = jnp.sum(y, axis=0, keepdims=True)        # (1, Cp)
                sq = jnp.sum(y * y, axis=0, keepdims=True)   # (1, Cp)
                row = lax.broadcasted_iota(jnp.int32, (8, 1), 0)
                stats_ref[0] = jnp.where(row == 0, s, jnp.where(row == 1, sq, 0.0))
            if act == "lrelu":
                y = jnp.where(y >= 0, y, LRELU_SLOPE * y)
            elif act == "sigmoid":
                y = jax.nn.sigmoid(y)
            y_ref[...] = y.astype(y_ref.dtype)

    return kernel


def _affine_lrelu_kernel(y_ref, scale_ref, shift_ref, o_ref):
    """Fused per-channel scale/shift (folded BatchNorm) + LeakyReLU(0.2).
    bf16 in / bf16 out, math in f32."""
    y = y_ref[...].astype(jnp.float32) * scale_ref[...] + shift_ref[...]
    o_ref[...] = jnp.where(y >= 0, y, LRELU_SLOPE * y).astype(o_ref.dtype)


# ---------------------------------------------------------------------------
# pallas_call wrappers
# ---------------------------------------------------------------------------
def _conv_matmul_pallas(xcol_p, w_p, bias_p, *, compute_stats, act, tm, tk, out_dtype):
    Mp, Kp = xcol_p.shape
    Cp = w_p.shape[1]
    gm, gk = Mp // tm, Kp // tk

    in_specs = [
        pl.BlockSpec((tm, tk), lambda i, k: (i, k)),
        pl.BlockSpec((tk, Cp), lambda i, k: (k, 0)),
    ]
    inputs = [xcol_p, w_p]
    if bias_p is not None:
        in_specs.append(pl.BlockSpec((1, Cp), lambda i, k: (0, 0)))
        inputs.append(bias_p)

    out_shapes = [jax.ShapeDtypeStruct((Mp, Cp), out_dtype)]
    out_specs = [pl.BlockSpec((tm, Cp), lambda i, k: (i, 0))]
    if compute_stats:
        out_shapes.append(jax.ShapeDtypeStruct((gm, 8, Cp), jnp.float32))
        out_specs.append(pl.BlockSpec((1, 8, Cp), lambda i, k: (i, 0, 0)))

    kernel = _make_matmul_kernel(use_bias=bias_p is not None,
                                 compute_stats=compute_stats, act=act)
    outs = pl.pallas_call(
        kernel,
        out_shape=tuple(out_shapes),
        grid=(gm, gk),
        in_specs=in_specs,
        out_specs=tuple(out_specs),
        scratch_shapes=[pltpu.VMEM((tm, Cp), jnp.float32)],
        compiler_params=pltpu.CompilerParams(
            dimension_semantics=("parallel", "arbitrary"),
            vmem_limit_bytes=VMEM_LIMIT),
    )(*inputs)
    if compute_stats:
        return outs[0], outs[1]
    return outs[0]


def _affine_lrelu_pallas(y_p, scale, shift, *, tm):
    Mp, Cp = y_p.shape
    gm = Mp // tm
    return pl.pallas_call(
        _affine_lrelu_kernel,
        out_shape=jax.ShapeDtypeStruct((Mp, Cp), jnp.bfloat16),
        grid=(gm,),
        in_specs=[pl.BlockSpec((tm, Cp), lambda i: (i, 0)),
                  pl.BlockSpec((1, Cp), lambda i: (0, 0)),
                  pl.BlockSpec((1, Cp), lambda i: (0, 0))],
        out_specs=pl.BlockSpec((tm, Cp), lambda i: (i, 0)),
        compiler_params=pltpu.CompilerParams(dimension_semantics=("parallel",)),
    )(y_p, scale, shift)


# ---------------------------------------------------------------------------
# Glue: im2col, per-layer driver, parameter construction, full forward
# ---------------------------------------------------------------------------
def _im2col(x_nhwc, stride):
    """Extract 4x4 patches -> (N*OH*OW, KH*KW*Cin), patch element order (kh, kw, ci).
    Stays in the input dtype (bf16) so the duplicated patch matrix is bf16."""
    N, H, W, Cin = x_nhwc.shape
    xp = jnp.pad(x_nhwc, ((0, 0), (PADW, PADW), (PADW, PADW), (0, 0)))
    Hp, Wp = H + 2 * PADW, W + 2 * PADW
    OH = (Hp - KW) // stride + 1
    OW = (Wp - KW) // stride + 1
    cols = []
    for kh in range(KW):
        for kw in range(KW):
            sl = xp[:, kh:kh + stride * (OH - 1) + 1:stride,
                    kw:kw + stride * (OW - 1) + 1:stride, :]
            cols.append(sl)
    xcol = jnp.concatenate(cols, axis=-1)            # (N, OH, OW, KH*KW*Cin)
    return xcol.reshape(N * OH * OW, KW * KW * Cin), (N, OH, OW)


def _pad2(a, rows, cols):
    r, c = a.shape
    return jnp.pad(a, ((0, rows - r), (0, cols - c)))


def _layer_forward(x_nhwc, cfg, *, out_dtype):
    xcol, (N, OH, OW) = _im2col(x_nhwc, cfg["stride"])   # bf16
    M, K = xcol.shape
    C = cfg["w_mat"].shape[1]

    # (8,128)/bf16-pack-aligned, MXU-friendly padding + per-layer tile choice.
    Cp = _round_up(C, 128)
    Kp = _round_up(K, 128)
    tk = next(t for t in (TK_TARGET, 512, 256, 128) if Kp % t == 0)
    Mp = _round_up(M, 16)
    if Mp <= TM_TARGET:
        tm = Mp
    else:
        tm = TM_TARGET
        Mp = _round_up(Mp, tm)

    xcol_p = _pad2(xcol, Mp, Kp)                          # bf16, no extra cast
    w_p = _pad2(cfg["w_mat"], Kp, Cp).astype(jnp.bfloat16)

    if cfg["use_bn"]:
        y_p, stats = _conv_matmul_pallas(xcol_p, w_p, None,
                                         compute_stats=True, act=None,
                                         tm=tm, tk=tk, out_dtype=jnp.bfloat16)
        tot = jnp.sum(stats, axis=0)                 # (8, Cp): row0 = sum, row1 = sumsq
        mean = tot[0] / M
        # TODO(synk): E[y^2]-E[y]^2 can cancel when |mean| >> std; switch to a
        # centered second accumulation pass if BN fidelity ever matters here.
        var = tot[1] / M - mean * mean
        gamma_p = _pad2(cfg["gamma"], 1, Cp)
        beta_p = _pad2(cfg["beta"], 1, Cp)
        scale = gamma_p * lax.rsqrt(var + BN_EPS)    # (1, Cp)
        shift = beta_p - mean * scale                # (1, Cp)
        y_p = _affine_lrelu_pallas(y_p, scale, shift, tm=tm)
    else:
        b_p = _pad2(cfg["b"], 1, Cp)
        act = "lrelu" if cfg["use_lrelu"] else ("sigmoid" if cfg["use_sigmoid"] else None)
        y_p = _conv_matmul_pallas(xcol_p, w_p, b_p,
                                  compute_stats=False, act=act,
                                  tm=tm, tk=tk, out_dtype=out_dtype)

    y = y_p[:M, :C]
    return y.reshape(N, OH, OW, C)


def init_nlayer_discriminator_params(key, input_nc, ndf=64, n_layers=3, use_sigmoid=False):
    """Deterministic parameter init mirroring NLayerDiscriminator.__init__
    (norm_layer = BatchNorm2d  =>  use_bias = False for the inner convs).
    BN uses batch statistics only (train-mode); no running-stats/eval path."""
    keys = iter(jax.random.split(key, 4 * (n_layers + 2)))

    def w_mat_of(cout, cin):
        # PyTorch conv weight (Cout, Cin, KH, KW) -> matmul matrix (KH*KW*Cin, Cout)
        w = jax.random.normal(next(keys), (cout, cin, KW, KW), jnp.float32) * 0.02
        return jnp.transpose(w, (2, 3, 1, 0)).reshape(KW * KW * cin, cout)

    cfgs = []
    # First conv: bias, LeakyReLU, stride 2
    cfgs.append(dict(stride=2, use_bias=True, use_bn=False, use_lrelu=True, use_sigmoid=False,
                     w_mat=w_mat_of(ndf, input_nc),
                     b=jax.random.normal(next(keys), (1, ndf), jnp.float32) * 0.02))
    nf_mult = 1
    for n in range(1, n_layers):
        nf_prev, nf_mult = nf_mult, min(2 ** n, 8)
        cin, cout = ndf * nf_prev, ndf * nf_mult
        cfgs.append(dict(stride=2, use_bias=False, use_bn=True, use_lrelu=True, use_sigmoid=False,
                         w_mat=w_mat_of(cout, cin),
                         gamma=1.0 + jax.random.normal(next(keys), (1, cout), jnp.float32) * 0.02,
                         beta=jax.random.normal(next(keys), (1, cout), jnp.float32) * 0.02))
    nf_prev, nf_mult = nf_mult, min(2 ** n_layers, 8)
    cin, cout = ndf * nf_prev, ndf * nf_mult
    cfgs.append(dict(stride=1, use_bias=False, use_bn=True, use_lrelu=True, use_sigmoid=False,
                     w_mat=w_mat_of(cout, cin),
                     gamma=1.0 + jax.random.normal(next(keys), (1, cout), jnp.float32) * 0.02,
                     beta=jax.random.normal(next(keys), (1, cout), jnp.float32) * 0.02))
    # Final 1-channel conv: bias, no norm, no activation (sigmoid only if requested)
    cfgs.append(dict(stride=1, use_bias=True, use_bn=False, use_lrelu=False, use_sigmoid=use_sigmoid,
                     w_mat=w_mat_of(1, ndf * nf_mult),
                     b=jax.random.normal(next(keys), (1, 1), jnp.float32) * 0.02))
    return dict(cfgs=cfgs)


def nlayer_discriminator_forward(x_nchw, params):
    x = jnp.transpose(x_nchw, (0, 2, 3, 1)).astype(jnp.bfloat16)   # NCHW -> NHWC, bf16
    cfgs = params["cfgs"]
    for i, cfg in enumerate(cfgs):
        last = i == len(cfgs) - 1
        x = _layer_forward(x, cfg, out_dtype=jnp.float32 if last else jnp.bfloat16)
    return jnp.transpose(x, (0, 3, 1, 2)).astype(jnp.float32)      # NHWC -> NCHW


# ---------------------------------------------------------------------------
# Pure-JAX reference mirroring the kernel's bf16-operand / f32-accumulate math
# and the bf16 quantization points of the intermediate activations.
# ---------------------------------------------------------------------------
def reference_forward(x_nchw, params):
    x = jnp.transpose(x_nchw, (0, 2, 3, 1)).astype(jnp.bfloat16)
    cfgs = params["cfgs"]
    for i, cfg in enumerate(cfgs):
        last = i == len(cfgs) - 1
        Kc, C = cfg["w_mat"].shape
        cin = Kc // (KW * KW)
        w_hwio = cfg["w_mat"].reshape(KW, KW, cin, C)
        y = lax.conv_general_dilated(
            x, w_hwio.astype(jnp.bfloat16),
            (cfg["stride"],) * 2, ((PADW, PADW), (PADW, PADW)),
            dimension_numbers=("NHWC", "HWIO", "NHWC"),
            preferred_element_type=jnp.float32)
        if cfg["use_bias"]:
            y = y + cfg["b"].reshape(1, 1, 1, -1)
        if cfg["use_bn"]:
            mean = jnp.mean(y, axis=(0, 1, 2), keepdims=True)
            var = jnp.mean(y * y, axis=(0, 1, 2), keepdims=True) - mean * mean
            scale = cfg["gamma"].reshape(1, 1, 1, -1) * lax.rsqrt(var + BN_EPS)
            shift = cfg["beta"].reshape(1, 1, 1, -1) - mean * scale
            y = y.astype(jnp.bfloat16).astype(jnp.float32)   # mirror bf16 matmul output
            y = y * scale + shift
        if cfg["use_lrelu"]:
            y = jnp.where(y >= 0, y, LRELU_SLOPE * y)
        if cfg["use_sigmoid"]:
            y = jax.nn.sigmoid(y)
        x = y if last else y.astype(jnp.bfloat16)
    return jnp.transpose(x, (0, 3, 1, 2)).astype(jnp.float32)


if __name__ == "__main__":
    key = jax.random.PRNGKey(0)
    k_param, k_x = jax.random.split(key)

    # Small shapes consistent with the module: N=2, input_nc=4, H=W=16, ndf=8, n_layers=3
    input_nc, ndf, n_layers = 4, 8, 3
    x = jax.random.normal(k_x, (2, input_nc, 16, 16), jnp.float32)

    params = init_nlayer_discriminator_params(k_param, input_nc, ndf=ndf, n_layers=n_layers)

    out = jax.block_until_ready(nlayer_discriminator_forward(x, params))
    ref = jax.block_until_ready(reference_forward(x, params))

    assert out.shape == ref.shape == (2, 1, 5, 5), (out.shape, ref.shape)
    # bf16 operands + bf16 intermediate activations on both sides; the residual is
    # accumulation order and rare one-ulp bf16 rounding differences amplified by BN.
    err = float(jnp.max(jnp.abs(out - ref)))
    assert err < 1e-2, err

    print("KERNEL_OK")
</pallas_src>

<mosaic_0001>
module attributes {stable_mosaic.version = 11 : i64} {
  func.func @kernel(%arg0: i32, %arg1: i32, %arg2: memref<176x128xbf16, #tpu.memory_space<vmem>>, %arg3: memref<128x128xbf16, #tpu.memory_space<vmem>>, %arg4: memref<1x128xf32, #tpu.memory_space<vmem>>, %arg5: memref<176x128xbf16, #tpu.memory_space<vmem>>, %arg6: memref<176x128xf32, #tpu.memory_space<vmem>>) attributes {dimension_semantics = [#tpu.dimension_semantics<parallel>, #tpu.dimension_semantics<arbitrary>], iteration_bounds = array<i64: 1, 1>, scalar_prefetch = 0 : i64, scratch_operands = 1 : i64, tpu.core_type = #tpu.core_type<tc>, window_params = [{transform_indices = @transform_0, window_bounds = array<i64: 176, 128>}, {transform_indices = @transform_1, window_bounds = array<i64: 128, 128>}, {pipeline_mode = #tpu.pipeline_mode<synchronous>, transform_indices = @transform_2, window_bounds = array<i64: 1, 128>}, {transform_indices = @transform_3, window_bounds = array<i64: 176, 128>}]} {
    %c0_i32 = arith.constant 0 : i32
    %0 = arith.cmpi eq, %arg1, %c0_i32 : i32
    %1 = arith.extui %0 : i1 to i32
    %c0_i32_0 = arith.constant 0 : i32
    %2 = arith.cmpi ne, %1, %c0_i32_0 : i32
    scf.if %2 {
      %cst_10 = arith.constant 0.000000e+00 : f32
      %12 = vector.broadcast %cst_10 : f32 to vector<176x128xf32>
      %c0_11 = arith.constant 0 : index
      %c0_12 = arith.constant 0 : index
      %13 = vector.load %arg6[%c0_11, %c0_12] : memref<176x128xf32, #tpu.memory_space<vmem>>, vector<176x128xf32>
      tpu.vector_store %arg6[%c0_11, %c0_12], %12 {strides = array<i32>} : memref<176x128xf32, #tpu.memory_space<vmem>>, vector<176x128xf32>,
    } else {
    }
    %c0 = arith.constant 0 : index
    %c0_1 = arith.constant 0 : index
    %3 = vector.load %arg6[%c0, %c0_1] : memref<176x128xf32, #tpu.memory_space<vmem>>, vector<176x128xf32>
    %c0_2 = arith.constant 0 : index
    %c0_3 = arith.constant 0 : index
    %4 = vector.load %arg2[%c0_2, %c0_3] : memref<176x128xbf16, #tpu.memory_space<vmem>>, vector<176x128xbf16>
    %c0_4 = arith.constant 0 : index
    %c0_5 = arith.constant 0 : index
    %5 = vector.load %arg3[%c0_4, %c0_5] : memref<128x128xbf16, #tpu.memory_space<vmem>>, vector<128x128xbf16>
    %cst = arith.constant dense<0.000000e+00> : vector<176x128xf32>
    %6 = tpu.matmul %4, %5, %cst {dimension_numbers = #tpu.dot_dimension_numbers<[1], [0], [0], [1], [0, 0, 1, 1], [], []>} : vector<176x128xbf16>, vector<128x128xbf16>, vector<176x128xf32> -> vector<176x128xf32>
    %7 = arith.addf %3, %6 : vector<176x128xf32>
    %c0_6 = arith.constant 0 : index
    %c0_7 = arith.constant 0 : index
    %8 = vector.load %arg6[%c0_6, %c0_7] : memref<176x128xf32, #tpu.memory_space<vmem>>, vector<176x128xf32>
    tpu.vector_store %arg6[%c0_6, %c0_7], %7 {strides = array<i32>} : memref<176x128xf32, #tpu.memory_space<vmem>>, vector<176x128xf32>,
    %c0_i32_8 = arith.constant 0 : i32
    %9 = arith.cmpi eq, %arg1, %c0_i32_8 : i32
    %10 = arith.extui %9 : i1 to i32
    %c0_i32_9 = arith.constant 0 : i32
    %11 = arith.cmpi ne, %10, %c0_i32_9 : i32
    scf.if %11 {
      %c0_10 = arith.constant 0 : index
      %c0_11 = arith.constant 0 : index
      %12 = vector.load %arg6[%c0_10, %c0_11] : memref<176x128xf32, #tpu.memory_space<vmem>>, vector<176x128xf32>
      %c0_12 = arith.constant 0 : index
      %c0_13 = arith.constant 0 : index
      %13 = vector.load %arg4[%c0_12, %c0_13] : memref<1x128xf32, #tpu.memory_space<vmem>>, vector<1x128xf32>
      %14 = vector.broadcast %13 : vector<1x128xf32> to vector<176x128xf32>
      %15 = arith.addf %12, %14 : vector<176x128xf32>
      %cst_14 = arith.constant 0.000000e+00 : f32
      %16 = vector.broadcast %cst_14 : f32 to vector<176x128xf32>
      %17 = arith.cmpf oge, %15, %16 : vector<176x128xf32>
      %cst_15 = arith.constant 2.000000e-01 : f32
      %18 = vector.broadcast %cst_15 : f32 to vector<176x128xf32>
      %19 = arith.mulf %18, %15 : vector<176x128xf32>
      %20 = arith.select %17, %15, %19 : vector<176x128xi1>, vector<176x128xf32>
      %21 = arith.truncf %20 : vector<176x128xf32> to vector<176x128xbf16>
      %c0_16 = arith.constant 0 : index
      %c0_17 = arith.constant 0 : index
      %22 = vector.load %arg5[%c0_16, %c0_17] : memref<176x128xbf16, #tpu.memory_space<vmem>>, vector<176x128xbf16>
      tpu.vector_store %arg5[%c0_16, %c0_17], %21 {strides = array<i32>} : memref<176x128xbf16, #tpu.memory_space<vmem>>, vector<176x128xbf16>,
    } else {
    }
    return
  }
  func.func @transform_0(%arg0: i32, %arg1: i32) -> (i32, i32) {
    %c0_i32 = arith.constant 0 : i32
    return %arg0, %arg1 : i32, i32
  }
  func.func @transform_1(%arg0: i32, %arg1: i32) -> (i32, i32) {
    %c0_i32 = arith.constant 0 : i32
    %c0_i32_0 = arith.constant 0 : i32
    return %arg1, %c0_i32 : i32, i32
  }
  func.func @transform_2(%arg0: i32, %arg1: i32) -> (i32, i32) {
    %c0_i32 = arith.constant 0 : i32
    %c0_i32_0 = arith.constant 0 : i32
    %c0_i32_1 = arith.constant 0 : i32
    return %c0_i32, %c0_i32_0 : i32, i32
  }
  func.func @transform_3(%arg0: i32, %arg1: i32) -> (i32, i32) {
    %c0_i32 = arith.constant 0 : i32
    %c0_i32_0 = arith.constant 0 : i32
    return %arg0, %c0_i32 : i32, i32
  }
}

</mosaic_0001>

<llo_original>
// kernel: tpu_custom_call.1
$region0: #{tpu_custom_call.1}
  #allocation0 [shape = 'u32[]', space=smem, size = 0x4, offset = 0x4, fixed_abs, tag = 'smem constant byte address 0x4 - core index']
  #allocation1 [shape = 'u32[144,128]{1,0:T(1,128)}', space=vmem, size = 0x12000, scoped, tag = 'internal scratch']
  #allocation2 [shape = 'f32[176,128]{1,0:T(8,128)}', space=vmem, size = 0x16000, scoped, tag = 'scratch operand']
  %s0 = inlined_call_operand.hbm [shape: bf16[176,128], index: 0, kind: input, shape index: {}]
  %s1 = inlined_call_operand.hbm [shape: bf16[128,128], index: 1, kind: input, shape index: {}]
  %s2 = inlined_call_operand.vmem [shape: f32[1,128], index: 2, kind: input, shape index: {}]
  %s3 = inlined_call_operand.hbm [shape: bf16[176,128], index: 3, kind: output, shape index: {}]
  %s4 = sld [smem:[#allocation0]]
  $region38: #{tpu_custom_call.1} parent=0
    _
  %s6 = ssub.s32 1, %s4
  %s7 = scalar_select 0, %s6, %s4
  $region1: #{tpu_custom_call.1} parent=0
    #allocation3 [shape = 'u8[45056]{0}', space=vmem, size = 0xb000, scoped, tag = 'input window, operand 0, single buffered']
    #allocation4 [shape = 's32[1]{0}', space=sflag, size = 0x4, scoped, tag = 'scoped memory for tpu_custom_call.1']
    #allocation5 [shape = 's32[1]{0}', space=sflag, size = 0x4, scoped, tag = 'scoped memory for tpu_custom_call.1']
    #allocation6 [shape = 'u8[32768]{0}', space=vmem, size = 0x8000, scoped, tag = 'input window, operand 1, single buffered']
    #allocation7 [shape = 's32[1]{0}', space=sflag, size = 0x4, scoped, tag = 'scoped memory for tpu_custom_call.1']
    #allocation8 [shape = 'u8[45056]{0}', space=vmem, size = 0xb000, scoped, tag = 'output window, operand 0, single buffered']
    %8 = vsyncpa [#allocation4], 0
    %9 = vsyncpa [#allocation7], 0
    %10 = vsyncpa [#allocation5], 0
    // Predicated region
    $region2: #{tpu_custom_call.1} parent=1 // pred_check
      _
    $region3: #{tpu_custom_call.1} parent=1 // pred_check_branch
      %12 = sbr.rel (0) target = $region5
    $region4: #{tpu_custom_call.1} parent=1 // pred_region
      %s14 = ssub.s32 1408, 1408
      %15 = vsyncadd [#allocation4], %s14
      %s16 = sshll.u32 [#allocation3], 4
      %s17 = int_to_ptr.vmem [resolvable:$true] %s16
      %22 = dma.hbm_to_vmem [thread:$0]  %s0, 1408, %s17, [#allocation4], 64, 64, 4
    $region5: #{tpu_custom_call.1} parent=1 // pred_fallthru
      _
    // Predicated region
    $region6: #{tpu_custom_call.1} parent=1 // pred_check
      _
    $region7: #{tpu_custom_call.1} parent=1 // pred_check_branch
      %24 = sbr.rel (0) target = $region9
    $region8: #{tpu_custom_call.1} parent=1 // pred_region
      %s26 = ssub.s32 1024, 1024
      %27 = vsyncadd [#allocation7], %s26
      %s28 = sshll.u32 [#allocation6], 4
      %s29 = int_to_ptr.vmem [resolvable:$true] %s28
      %34 = dma.hbm_to_vmem [thread:$0]  %s1, 1024, %s29, [#allocation7], 64, 64, 4
    $region9: #{tpu_custom_call.1} parent=1 // pred_fallthru
      _
    // Predicated region
    $region10: #{tpu_custom_call.1} parent=1 // pred_check
      _
    $region11: #{tpu_custom_call.1} parent=1 // pred_check_branch
      %36 = sbr.rel (0) target = $region13
    $region12: #{tpu_custom_call.1} parent=1 // pred_region
      _
    $region13: #{tpu_custom_call.1} parent=1 // pred_fallthru
      _
    // Predicated region
    $region14: #{tpu_custom_call.1} parent=1 // pred_check
      _
    $region15: #{tpu_custom_call.1} parent=1 // pred_check_branch
      %38 = sbr.rel (0) target = $region17
    $region16: #{tpu_custom_call.1} parent=1 // pred_region
      %39 = dma.done [#allocation4], 1408
    $region17: #{tpu_custom_call.1} parent=1 // pred_fallthru
      _
    // Predicated region
    $region18: #{tpu_custom_call.1} parent=1 // pred_check
      _
    $region19: #{tpu_custom_call.1} parent=1 // pred_check_branch
      %41 = sbr.rel (0) target = $region21
    $region20: #{tpu_custom_call.1} parent=1 // pred_region
      %42 = dma.done [#allocation7], 1024
    $region21: #{tpu_custom_call.1} parent=1 // pred_fallthru
      _
    %p44 = scmp.eq.s32.totalorder 0, 0
    // Predicated region
    $region22: #{tpu_custom_call.1} parent=1 // pred_check
      %p45 = pneg %p44
    $region23: #{tpu_custom_call.1} parent=1 // pred_check_branch
      %47 = sbr.rel (%p45) target = $region25
    $region24: #{tpu_custom_call.1} parent=1 // pred_region
      %48 = vst [vmem:[#allocation2] sm:$0xff] 0.0
      %49 = vst [vmem:[#allocation2 + $0x8] sm:$0xff] 0.0
      %50 = vst [vmem:[#allocation2 + $0x10] sm:$0xff] 0.0
      %51 = vst [vmem:[#allocation2 + $0x18] sm:$0xff] 0.0
      %52 = vst [vmem:[#allocation2 + $0x20] sm:$0xff] 0.0
      %53 = vst [vmem:[#allocation2 + $0x28] sm:$0xff] 0.0
      %54 = vst [vmem:[#allocation2 + $0x30] sm:$0xff] 0.0
      %55 = vst [vmem:[#allocation2 + $0x38] sm:$0xff] 0.0
      %56 = vst [vmem:[#allocation2 + $0x40] sm:$0xff] 0.0
      %57 = vst [vmem:[#allocation2 + $0x48] sm:$0xff] 0.0
      %58 = vst [vmem:[#allocation2 + $0x50] sm:$0xff] 0.0
      %59 = vst [vmem:[#allocation2 + $0x58] sm:$0xff] 0.0
      %60 = vst [vmem:[#allocation2 + $0x60] sm:$0xff] 0.0
      %61 = vst [vmem:[#allocation2 + $0x68] sm:$0xff] 0.0
      %62 = vst [vmem:[#allocation2 + $0x70] sm:$0xff] 0.0
      %63 = vst [vmem:[#allocation2 + $0x78] sm:$0xff] 0.0
      %64 = vst [vmem:[#allocation2 + $0x80] sm:$0xff] 0.0
      %65 = vst [vmem:[#allocation2 + $0x88] sm:$0xff] 0.0
      %66 = vst [vmem:[#allocation2 + $0x90] sm:$0xff] 0.0
      %67 = vst [vmem:[#allocation2 + $0x98] sm:$0xff] 0.0
      %68 = vst [vmem:[#allocation2 + $0xa0] sm:$0xff] 0.0
      %69 = vst [vmem:[#allocation2 + $0xa8] sm:$0xff] 0.0
    $region25: #{tpu_custom_call.1} parent=1 // pred_fallthru
      _
    %v70 = vld [vmem:[#allocation2] sm:$0xff]
    %v71 = vld [vmem:[#allocation2 + $0x8] sm:$0xff]
    %v72 = vld [vmem:[#allocation2 + $0x10] sm:$0xff]
    %v73 = vld [vmem:[#allocation2 + $0x18] sm:$0xff]
    %v74 = vld [vmem:[#allocation2 + $0x20] sm:$0xff]
    %v75 = vld [vmem:[#allocation2 + $0x28] sm:$0xff]
    %v76 = vld [vmem:[#allocation2 + $0x30] sm:$0xff]
    %v77 = vld [vmem:[#allocation2 + $0x38] sm:$0xff]
    %v78 = vld [vmem:[#allocation2 + $0x40] sm:$0xff]
    %v79 = vld [vmem:[#allocation2 + $0x48] sm:$0xff]
    %v80 = vld [vmem:[#allocation2 + $0x50] sm:$0xff]
    %v81 = vld [vmem:[#allocation2 + $0x58] sm:$0xff]
    %v82 = vld [vmem:[#allocation2 + $0x60] sm:$0xff]
    %v83 = vld [vmem:[#allocation2 + $0x68] sm:$0xff]
    %v84 = vld [vmem:[#allocation2 + $0x70] sm:$0xff]
    %v85 = vld [vmem:[#allocation2 + $0x78] sm:$0xff]
    %v86 = vld [vmem:[#allocation2 + $0x80] sm:$0xff]
    %v87 = vld [vmem:[#allocation2 + $0x88] sm:$0xff]
    %v88 = vld [vmem:[#allocation2 + $0x90] sm:$0xff]
    %v89 = vld [vmem:[#allocation2 + $0x98] sm:$0xff]
    %v90 = vld [vmem:[#allocation2 + $0xa0] sm:$0xff]
    %v91 = vld [vmem:[#allocation2 + $0xa8] sm:$0xff]
    %v92 = vld [vmem:[#allocation3] sm:$0xf]
    %v93 = vld [vmem:[#allocation3 + $0x4] sm:$0xf]
    %v94 = vld [vmem:[#allocation3 + $0x8] sm:$0xf]
    %v95 = vld [vmem:[#allocation3 + $0xc] sm:$0xf]
    %v96 = vld [vmem:[#allocation3 + $0x10] sm:$0xf]
    %v97 = vld [vmem:[#allocation3 + $0x14] sm:$0xf]
    %v98 = vld [vmem:[#allocation3 + $0x18] sm:$0xf]
    %v99 = vld [vmem:[#allocation3 + $0x1c] sm:$0xf]
    %v100 = vld [vmem:[#allocation3 + $0x20] sm:$0xf]
    %v101 = vld [vmem:[#allocation3 + $0x24] sm:$0xf]
    %v102 = vld [vmem:[#allocation3 + $0x28] sm:$0xf]
    %v103 = vld [vmem:[#allocation3 + $0x2c] sm:$0xf]
    %v104 = vld [vmem:[#allocation3 + $0x30] sm:$0xf]
    %v105 = vld [vmem:[#allocation3 + $0x34] sm:$0xf]
    %v106 = vld [vmem:[#allocation3 + $0x38] sm:$0xf]
    %v107 = vld [vmem:[#allocation3 + $0x3c] sm:$0xf]
    %v108 = vld [vmem:[#allocation3 + $0x40] sm:$0xf]
    %v109 = vld [vmem:[#allocation3 + $0x44] sm:$0xf]
    %v110 = vld [vmem:[#allocation3 + $0x48] sm:$0xf]
    %v111 = vld [vmem:[#allocation3 + $0x4c] sm:$0xf]
    %v112 = vld [vmem:[#allocation3 + $0x50] sm:$0xf]
    %v113 = vld [vmem:[#allocation3 + $0x54] sm:$0xf]
    %v114 = vld [vmem:[#allocation6] sm:$0xf]
    %v115 = vld [vmem:[#allocation6 + $0x4] sm:$0xf]
    %v116 = vld [vmem:[#allocation6 + $0x8] sm:$0xf]
    %v117 = vld [vmem:[#allocation6 + $0xc] sm:$0xf]
    %v118 = vld [vmem:[#allocation6 + $0x10] sm:$0xf]
    %v119 = vld [vmem:[#allocation6 + $0x14] sm:$0xf]
    %v120 = vld [vmem:[#allocation6 + $0x18] sm:$0xf]
    %v121 = vld [vmem:[#allocation6 + $0x1c] sm:$0xf]
    %v122 = vld [vmem:[#allocation6 + $0x20] sm:$0xf]
    %v123 = vld [vmem:[#allocation6 + $0x24] sm:$0xf]
    %v124 = vld [vmem:[#allocation6 + $0x28] sm:$0xf]
    %v125 = vld [vmem:[#allocation6 + $0x2c] sm:$0xf]
    %v126 = vld [vmem:[#allocation6 + $0x30] sm:$0xf]
    %v127 = vld [vmem:[#allocation6 + $0x34] sm:$0xf]
    %v128 = vld [vmem:[#allocation6 + $0x38] sm:$0xf]
    %v129 = vld [vmem:[#allocation6 + $0x3c] sm:$0xf]
    %v152 = vunpack.c.l.b16 %v92
    %v153 = vunpack.c.l.b16 %v93
    %v154 = vunpack.c.l.b16 %v94
    %v155 = vunpack.c.l.b16 %v95
    %v156 = vunpack.c.l.b16 %v96
    %v157 = vunpack.c.l.b16 %v97
    %v158 = vunpack.c.l.b16 %v98
    %v159 = vunpack.c.l.b16 %v99
    %v160 = vunpack.c.l.b16 %v100
    %v161 = vunpack.c.l.b16 %v101
    %v162 = vunpack.c.l.b16 %v102
    %v163 = vunpack.c.l.b16 %v103
    %v164 = vunpack.c.l.b16 %v104
    %v165 = vunpack.c.l.b16 %v105
    %v166 = vunpack.c.l.b16 %v106
    %v167 = vunpack.c.l.b16 %v107
    %v168 = vunpack.c.l.b16 %v108
    %v169 = vunpack.c.l.b16 %v109
    %v170 = vunpack.c.l.b16 %v110
    %v171 = vunpack.c.l.b16 %v111
    %v172 = vunpack.c.l.b16 %v112
    %v173 = vunpack.c.l.b16 %v113
    %v174 = vpack.c.b16 %v153, %v152
    %v175 = vpack.c.b16 %v155, %v154
    %v176 = vpack.c.b16 %v157, %v156
    %v177 = vpack.c.b16 %v159, %v158
    %v178 = vpack.c.b16 %v161, %v160
    %v179 = vpack.c.b16 %v163, %v162
    %v180 = vpack.c.b16 %v165, %v164
    %v181 = vpack.c.b16 %v167, %v166
    %v182 = vpack.c.b16 %v169, %v168
    %v183 = vpack.c.b16 %v171, %v170
    %v184 = vpack.c.b16 %v173, %v172
    %v212 = vunpack.c.l.b16 %v114
    %v213 = vunpack.c.l.b16 %v115
    %v214 = vunpack.c.l.b16 %v116
    %v215 = vunpack.c.l.b16 %v117
    %v216 = vunpack.c.l.b16 %v118
    %v217 = vunpack.c.l.b16 %v119
    %v218 = vunpack.c.l.b16 %v120
    %v219 = vunpack.c.l.b16 %v121
    %v220 = vunpack.c.l.b16 %v122
    %v221 = vunpack.c.l.b16 %v123
    %v222 = vunpack.c.l.b16 %v124
    %v223 = vunpack.c.l.b16 %v125
    %v224 = vunpack.c.l.b16 %v126
    %v225 = vunpack.c.l.b16 %v127
    %v226 = vunpack.c.l.b16 %v128
    %v227 = vunpack.c.l.b16 %v129
    %v228 = vpack.c.b16 %v213, %v212
    %v229 = vpack.c.b16 %v215, %v214
    %v230 = vpack.c.b16 %v217, %v216
    %v231 = vpack.c.b16 %v219, %v218
    %v232 = vpack.c.b16 %v221, %v220
    %v233 = vpack.c.b16 %v223, %v222
    %v234 = vpack.c.b16 %v225, %v224
    %v235 = vpack.c.b16 %v227, %v226
    %244 = vmatprep.subr.bf16.mxu0 0
    %245 = vmatpush1.bf16.msra.mxu0 %v235
    %246 = vmatprep.subr.bf16.mxu0 0
    %247 = vmatpush1.bf16.msra.mxu0 %v234
    %248 = vmatprep.subr.bf16.mxu0 0
    %249 = vmatpush1.bf16.msra.mxu0 %v233
    %250 = vmatprep.subr.bf16.mxu0 0
    %251 = vmatpush1.bf16.msra.mxu0 %v232
    %252 = vmatprep.subr.bf16.mxu0 0
    %253 = vmatpush1.bf16.msra.mxu0 %v231
    %254 = vmatprep.subr.bf16.mxu0 0
    %255 = vmatpush1.bf16.msra.mxu0 %v230
    %256 = vmatprep.subr.bf16.mxu0 0
    %257 = vmatpush1.bf16.msra.mxu0 %v229
    %258 = vmatprep.subr.bf16.mxu0 0
    %259 = vmatpush1.bf16.msra.mxu0 %v228
    %260 = vmatprep.subr.bf16.mxu0 0
    %261 = vmatpush2.bf16.msra.mxu0 0
    %262 = vmatprep.subr.bf16.mxu0 0
    %263 = vmatpush2.bf16.msra.mxu0 0
    %264 = vmatprep.subr.bf16.mxu0 0
    %265 = vmatpush2.bf16.msra.mxu0 0
    %266 = vmatprep.subr.bf16.mxu0 0
    %267 = vmatpush2.bf16.msra.mxu0 0
    %268 = vmatprep.subr.bf16.mxu0 0
    %269 = vmatpush2.bf16.msra.mxu0 0
    %270 = vmatprep.subr.bf16.mxu0 0
    %271 = vmatpush2.bf16.msra.mxu0 0
    %272 = vmatprep.subr.bf16.mxu0 0
    %273 = vmatpush2.bf16.msra.mxu0 0
    %274 = vmatprep.subr.bf16.mxu0 0
    %275 = vmatpush2.bf16.msra.mxu0 0
    %276 = vmatprep.mubr.bf16.mxu0 0
    %277 = vmatmul.mubr.bf16.gmra.mxu0 %v174
    %v278 = vpop.f32.mrf.mxu0
    %v279 = vadd.f32 0.0, %v278
    %v280 = vpop.f32.mrf.mxu0
    %v281 = vpop.f32.mrf.mxu0
    %v282 = vadd.f32 0.0, %v281
    %v283 = vpop.f32.mrf.mxu0
    %284 = vmatprep.mubr.bf16.mxu0 0
    %285 = vmatmul.mubr.bf16.gmra.mxu0 %v175
    %v286 = vpop.f32.mrf.mxu0
    %v287 = vadd.f32 0.0, %v286
    %v288 = vpop.f32.mrf.mxu0
    %v289 = vpop.f32.mrf.mxu0
    %v290 = vadd.f32 0.0, %v289
    %v291 = vpop.f32.mrf.mxu0
    %292 = vmatprep.mubr.bf16.mxu0 0
    %293 = vmatmul.mubr.bf16.gmra.mxu0 %v176
    %v294 = vpop.f32.mrf.mxu0
    %v295 = vadd.f32 0.0, %v294
    %v296 = vpop.f32.mrf.mxu0
    %v297 = vpop.f32.mrf.mxu0
    %v298 = vadd.f32 0.0, %v297
    %v299 = vpop.f32.mrf.mxu0
    %300 = vmatprep.mubr.bf16.mxu0 0
    %301 = vmatmul.mubr.bf16.gmra.mxu0 %v177
    %v302 = vpop.f32.mrf.mxu0
    %v303 = vadd.f32 0.0, %v302
    %v304 = vpop.f32.mrf.mxu0
    %v305 = vpop.f32.mrf.mxu0
    %v306 = vadd.f32 0.0, %v305
    %v307 = vpop.f32.mrf.mxu0
    %308 = vmatprep.mubr.bf16.mxu0 0
    %309 = vmatmul.mubr.bf16.gmra.mxu0 %v178
    %v310 = vpop.f32.mrf.mxu0
    %v311 = vadd.f32 0.0, %v310
    %v312 = vpop.f32.mrf.mxu0
    %v313 = vpop.f32.mrf.mxu0
    %v314 = vadd.f32 0.0, %v313
    %v315 = vpop.f32.mrf.mxu0
    %316 = vmatprep.mubr.bf16.mxu0 0
    %317 = vmatmul.mubr.bf16.gmra.mxu0 %v179
    %v318 = vpop.f32.mrf.mxu0
    %v319 = vadd.f32 0.0, %v318
    %v320 = vpop.f32.mrf.mxu0
    %v321 = vpop.f32.mrf.mxu0
    %v322 = vadd.f32 0.0, %v321
    %v323 = vpop.f32.mrf.mxu0
    %324 = vmatprep.mubr.bf16.mxu0 0
    %325 = vmatmul.mubr.bf16.gmra.mxu0 %v180
    %v326 = vpop.f32.mrf.mxu0
    %v327 = vadd.f32 0.0, %v326
    %v328 = vpop.f32.mrf.mxu0
    %v329 = vpop.f32.mrf.mxu0
    %v330 = vadd.f32 0.0, %v329
    %v331 = vpop.f32.mrf.mxu0
    %332 = vmatprep.mubr.bf16.mxu0 0
    %333 = vmatmul.mubr.bf16.gmra.mxu0 %v181
    %v334 = vpop.f32.mrf.mxu0
    %v335 = vadd.f32 0.0, %v334
    %v336 = vpop.f32.mrf.mxu0
    %v337 = vpop.f32.mrf.mxu0
    %v338 = vadd.f32 0.0, %v337
    %v339 = vpop.f32.mrf.mxu0
    %340 = vmatprep.mubr.bf16.mxu0 0
    %341 = vmatmul.mubr.bf16.gmra.mxu0 %v182
    %v342 = vpop.f32.mrf.mxu0
    %v343 = vadd.f32 0.0, %v342
    %v344 = vpop.f32.mrf.mxu0
    %v345 = vpop.f32.mrf.mxu0
    %v346 = vadd.f32 0.0, %v345
    %v347 = vpop.f32.mrf.mxu0
    %348 = vmatprep.mubr.bf16.mxu0 0
    %349 = vmatmul.mubr.bf16.gmra.mxu0 %v183
    %v350 = vpop.f32.mrf.mxu0
    %v351 = vadd.f32 0.0, %v350
    %v352 = vpop.f32.mrf.mxu0
    %v353 = vpop.f32.mrf.mxu0
    %v354 = vadd.f32 0.0, %v353
    %v355 = vpop.f32.mrf.mxu0
    %356 = vmatprep.mubr.bf16.mxu0 0
    %357 = vmatmul.mubr.bf16.gmra.mxu0 %v184
    %v358 = vpop.f32.mrf.mxu0
    %v359 = vadd.f32 0.0, %v358
    %v360 = vpop.f32.mrf.mxu0
    %v361 = vpop.f32.mrf.mxu0
    %v362 = vadd.f32 0.0, %v361
    %v363 = vpop.f32.mrf.mxu0
    %364 = vdwg.mxu0
    %v365 = vadd.f32 %v70, %v279
    %v366 = vadd.f32 %v71, %v282
    %v367 = vadd.f32 %v72, %v287
    %v368 = vadd.f32 %v73, %v290
    %v369 = vadd.f32 %v74, %v295
    %v370 = vadd.f32 %v75, %v298
    %v371 = vadd.f32 %v76, %v303
    %v372 = vadd.f32 %v77, %v306
    %v373 = vadd.f32 %v78, %v311
    %v374 = vadd.f32 %v79, %v314
    %v375 = vadd.f32 %v80, %v319
    %v376 = vadd.f32 %v81, %v322
    %v377 = vadd.f32 %v82, %v327
    %v378 = vadd.f32 %v83, %v330
    %v379 = vadd.f32 %v84, %v335
    %v380 = vadd.f32 %v85, %v338
    %v381 = vadd.f32 %v86, %v343
    %v382 = vadd.f32 %v87, %v346
    %v383 = vadd.f32 %v88, %v351
    %v384 = vadd.f32 %v89, %v354
    %v385 = vadd.f32 %v90, %v359
    %v386 = vadd.f32 %v91, %v362
    %387 = vst [vmem:[#allocation2] sm:$0xff] %v365
    %388 = vst [vmem:[#allocation2 + $0x8] sm:$0xff] %v366
    %389 = vst [vmem:[#allocation2 + $0x10] sm:$0xff] %v367
    %390 = vst [vmem:[#allocation2 + $0x18] sm:$0xff] %v368
    %391 = vst [vmem:[#allocation2 + $0x20] sm:$0xff] %v369
    %392 = vst [vmem:[#allocation2 + $0x28] sm:$0xff] %v370
    %393 = vst [vmem:[#allocation2 + $0x30] sm:$0xff] %v371
    %394 = vst [vmem:[#allocation2 + $0x38] sm:$0xff] %v372
    %395 = vst [vmem:[#allocation2 + $0x40] sm:$0xff] %v373
    %396 = vst [vmem:[#allocation2 + $0x48] sm:$0xff] %v374
    %397 = vst [vmem:[#allocation2 + $0x50] sm:$0xff] %v375
    %398 = vst [vmem:[#allocation2 + $0x58] sm:$0xff] %v376
    %399 = vst [vmem:[#allocation2 + $0x60] sm:$0xff] %v377
    %400 = vst [vmem:[#allocation2 + $0x68] sm:$0xff] %v378
    %401 = vst [vmem:[#allocation2 + $0x70] sm:$0xff] %v379
    %402 = vst [vmem:[#allocation2 + $0x78] sm:$0xff] %v380
    %403 = vst [vmem:[#allocation2 + $0x80] sm:$0xff] %v381
    %404 = vst [vmem:[#allocation2 + $0x88] sm:$0xff] %v382
    %405 = vst [vmem:[#allocation2 + $0x90] sm:$0xff] %v383
    %406 = vst [vmem:[#allocation2 + $0x98] sm:$0xff] %v384
    %407 = vst [vmem:[#allocation2 + $0xa0] sm:$0xff] %v385
    %408 = vst [vmem:[#allocation2 + $0xa8] sm:$0xff] %v386
    // Predicated region
    $region26: #{tpu_custom_call.1} parent=1 // pred_check
      %p409 = pneg %p44
    $region27: #{tpu_custom_call.1} parent=1 // pred_check_branch
      %411 = sbr.rel (%p409) target = $region29
    $region28: #{tpu_custom_call.1} parent=1 // pred_region
      %v412 = vld [vmem:[#allocation2] sm:$0xff]
      %v413 = vld [vmem:[#allocation2 + $0x8] sm:$0xff]
      %v414 = vld [vmem:[#allocation2 + $0x10] sm:$0xff]
      %v415 = vld [vmem:[#allocation2 + $0x18] sm:$0xff]
      %v416 = vld [vmem:[#allocation2 + $0x20] sm:$0xff]
      %v417 = vld [vmem:[#allocation2 + $0x28] sm:$0xff]
      %v418 = vld [vmem:[#allocation2 + $0x30] sm:$0xff]
      %v419 = vld [vmem:[#allocation2 + $0x38] sm:$0xff]
      %v420 = vld [vmem:[#allocation2 + $0x40] sm:$0xff]
      %v421 = vld [vmem:[#allocation2 + $0x48] sm:$0xff]
      %v422 = vld [vmem:[#allocation2 + $0x50] sm:$0xff]
      %v423 = vld [vmem:[#allocation2 + $0x58] sm:$0xff]
      %v424 = vld [vmem:[#allocation2 + $0x60] sm:$0xff]
      %v425 = vld [vmem:[#allocation2 + $0x68] sm:$0xff]
      %v426 = vld [vmem:[#allocation2 + $0x70] sm:$0xff]
      %v427 = vld [vmem:[#allocation2 + $0x78] sm:$0xff]
      %v428 = vld [vmem:[#allocation2 + $0x80] sm:$0xff]
      %v429 = vld [vmem:[#allocation2 + $0x88] sm:$0xff]
      %v430 = vld [vmem:[#allocation2 + $0x90] sm:$0xff]
      %v431 = vld [vmem:[#allocation2 + $0x98] sm:$0xff]
      %v432 = vld [vmem:[#allocation2 + $0xa0] sm:$0xff]
      %v433 = vld [vmem:[#allocation2 + $0xa8] sm:$0xff]
      %v434 = vld [vmem:[%s2] sm:$0x1]
      %v436 = vlaneseq
      %v437 = vshrl.u32 %v436, 7
      %v438 = vsub.s32 0, %v437
      %v439 = vrot.slane %v434, %v438
      %v441 = vadd.f32 %v412, %v439
      %v442 = vadd.f32 %v413, %v439
      %v443 = vadd.f32 %v414, %v439
      %v444 = vadd.f32 %v415, %v439
      %v445 = vadd.f32 %v416, %v439
      %v446 = vadd.f32 %v417, %v439
      %v447 = vadd.f32 %v418, %v439
      %v448 = vadd.f32 %v419, %v439
      %v449 = vadd.f32 %v420, %v439
      %v450 = vadd.f32 %v421, %v439
      %v451 = vadd.f32 %v422, %v439
      %v452 = vadd.f32 %v423, %v439
      %v453 = vadd.f32 %v424, %v439
      %v454 = vadd.f32 %v425, %v439
      %v455 = vadd.f32 %v426, %v439
      %v456 = vadd.f32 %v427, %v439
      %v457 = vadd.f32 %v428, %v439
      %v458 = vadd.f32 %v429, %v439
      %v459 = vadd.f32 %v430, %v439
      %v460 = vadd.f32 %v431, %v439
      %v461 = vadd.f32 %v432, %v439
      %v462 = vadd.f32 %v433, %v439
      %vm463 = vcmp.ge.f32.partialorder %v441, 0.0
      %vm464 = vcmp.ge.f32.partialorder %v442, 0.0
      %vm465 = vcmp.ge.f32.partialorder %v443, 0.0
      %vm466 = vcmp.ge.f32.partialorder %v444, 0.0
      %vm467 = vcmp.ge.f32.partialorder %v445, 0.0
      %vm468 = vcmp.ge.f32.partialorder %v446, 0.0
      %vm469 = vcmp.ge.f32.partialorder %v447, 0.0
      %vm470 = vcmp.ge.f32.partialorder %v448, 0.0
      %vm471 = vcmp.ge.f32.partialorder %v449, 0.0
      %vm472 = vcmp.ge.f32.partialorder %v450, 0.0
      %vm473 = vcmp.ge.f32.partialorder %v451, 0.0
      %vm474 = vcmp.ge.f32.partialorder %v452, 0.0
      %vm475 = vcmp.ge.f32.partialorder %v453, 0.0
      %vm476 = vcmp.ge.f32.partialorder %v454, 0.0
      %vm477 = vcmp.ge.f32.partialorder %v455, 0.0
      %vm478 = vcmp.ge.f32.partialorder %v456, 0.0
      %vm479 = vcmp.ge.f32.partialorder %v457, 0.0
      %vm480 = vcmp.ge.f32.partialorder %v458, 0.0
      %vm481 = vcmp.ge.f32.partialorder %v459, 0.0
      %vm482 = vcmp.ge.f32.partialorder %v460, 0.0
      %vm483 = vcmp.ge.f32.partialorder %v461, 0.0
      %vm484 = vcmp.ge.f32.partialorder %v462, 0.0
      %v485 = vmul.f32 %v441, 0.2
      %v486 = vmul.f32 %v442, 0.2
      %v487 = vmul.f32 %v443, 0.2
      %v488 = vmul.f32 %v444, 0.2
      %v489 = vmul.f32 %v445, 0.2
      %v490 = vmul.f32 %v446, 0.2
      %v491 = vmul.f32 %v447, 0.2
      %v492 = vmul.f32 %v448, 0.2
      %v493 = vmul.f32 %v449, 0.2
      %v494 = vmul.f32 %v450, 0.2
      %v495 = vmul.f32 %v451, 0.2
      %v496 = vmul.f32 %v452, 0.2
      %v497 = vmul.f32 %v453, 0.2
      %v498 = vmul.f32 %v454, 0.2
      %v499 = vmul.f32 %v455, 0.2
      %v500 = vmul.f32 %v456, 0.2
      %v501 = vmul.f32 %v457, 0.2
      %v502 = vmul.f32 %v458, 0.2
      %v503 = vmul.f32 %v459, 0.2
      %v504 = vmul.f32 %v460, 0.2
      %v505 = vmul.f32 %v461, 0.2
      %v506 = vmul.f32 %v462, 0.2
      %v507 = vsel %vm463, %v441, %v485
      %v508 = vsel %vm464, %v442, %v486
      %v509 = vsel %vm465, %v443, %v487
      %v510 = vsel %vm466, %v444, %v488
      %v511 = vsel %vm467, %v445, %v489
      %v512 = vsel %vm468, %v446, %v490
      %v513 = vsel %vm469, %v447, %v491
      %v514 = vsel %vm470, %v448, %v492
      %v515 = vsel %vm471, %v449, %v493
      %v516 = vsel %vm472, %v450, %v494
      %v517 = vsel %vm473, %v451, %v495
      %v518 = vsel %vm474, %v452, %v496
      %v519 = vsel %vm475, %v453, %v497
      %v520 = vsel %vm476, %v454, %v498
      %v521 = vsel %vm477, %v455, %v499
      %v522 = vsel %vm478, %v456, %v500
      %v523 = vsel %vm479, %v457, %v501
      %v524 = vsel %vm480, %v458, %v502
      %v525 = vsel %vm481, %v459, %v503
      %v526 = vsel %vm482, %v460, %v504
      %v527 = vsel %vm483, %v461, %v505
      %v528 = vsel %vm484, %v462, %v506
      %v529 = vpack.c.bf16 %v508, %v507
      %v530 = vpack.c.bf16 %v510, %v509
      %v531 = vpack.c.bf16 %v512, %v511
      %v532 = vpack.c.bf16 %v514, %v513
      %v533 = vpack.c.bf16 %v516, %v515
      %v534 = vpack.c.bf16 %v518, %v517
      %v535 = vpack.c.bf16 %v520, %v519
      %v536 = vpack.c.bf16 %v522, %v521
      %v537 = vpack.c.bf16 %v524, %v523
      %v538 = vpack.c.bf16 %v526, %v525
      %v539 = vpack.c.bf16 %v528, %v527
      %v551 = vunpack.c.l.b16 %v529
      %v552 = vunpack.c.h.b16 %v529
      %v553 = vunpack.c.l.b16 %v530
      %v554 = vunpack.c.h.b16 %v530
      %v555 = vunpack.c.l.b16 %v531
      %v556 = vunpack.c.h.b16 %v531
      %v557 = vunpack.c.l.b16 %v532
      %v558 = vunpack.c.h.b16 %v532
      %v559 = vunpack.c.l.b16 %v533
      %v560 = vunpack.c.h.b16 %v533
      %v561 = vunpack.c.l.b16 %v534
      %v562 = vunpack.c.h.b16 %v534
      %v563 = vunpack.c.l.b16 %v535
      %v564 = vunpack.c.h.b16 %v535
      %v565 = vunpack.c.l.b16 %v536
      %v566 = vunpack.c.h.b16 %v536
      %v567 = vunpack.c.l.b16 %v537
      %v568 = vunpack.c.h.b16 %v537
      %v569 = vunpack.c.l.b16 %v538
      %v570 = vunpack.c.h.b16 %v538
      %v571 = vunpack.c.l.b16 %v539
      %v572 = vunpack.c.h.b16 %v539
      %v573 = vpack.c.b16 %v551, %v551
      %v574 = vpack.c.b16 %v552, %v552
      %v575 = vpack.c.b16 %v553, %v553
      %v576 = vpack.c.b16 %v554, %v554
      %v577 = vpack.c.b16 %v555, %v555
      %v578 = vpack.c.b16 %v556, %v556
      %v579 = vpack.c.b16 %v557, %v557
      %v580 = vpack.c.b16 %v558, %v558
      %v581 = vpack.c.b16 %v559, %v559
      %v582 = vpack.c.b16 %v560, %v560
      %v583 = vpack.c.b16 %v561, %v561
      %v584 = vpack.c.b16 %v562, %v562
      %v585 = vpack.c.b16 %v563, %v563
      %v586 = vpack.c.b16 %v564, %v564
      %v587 = vpack.c.b16 %v565, %v565
      %v588 = vpack.c.b16 %v566, %v566
      %v589 = vpack.c.b16 %v567, %v567
      %v590 = vpack.c.b16 %v568, %v568
      %v591 = vpack.c.b16 %v569, %v569
      %v592 = vpack.c.b16 %v570, %v570
      %v593 = vpack.c.b16 %v571, %v571
      %v594 = vpack.c.b16 %v572, %v572
      %617 = vst [vmem:[#allocation8] sm:$0xf] %v573
      %618 = vst [vmem:[#allocation8 + $0x4] sm:$0xf] %v574
      %619 = vst [vmem:[#allocation8 + $0x8] sm:$0xf] %v575
      %620 = vst [vmem:[#allocation8 + $0xc] sm:$0xf] %v576
      %621 = vst [vmem:[#allocation8 + $0x10] sm:$0xf] %v577
      %622 = vst [vmem:[#allocation8 + $0x14] sm:$0xf] %v578
      %623 = vst [vmem:[#allocation8 + $0x18] sm:$0xf] %v579
      %624 = vst [vmem:[#allocation8 + $0x1c] sm:$0xf] %v580
      %625 = vst [vmem:[#allocation8 + $0x20] sm:$0xf] %v581
      %626 = vst [vmem:[#allocation8 + $0x24] sm:$0xf] %v582
      %627 = vst [vmem:[#allocation8 + $0x28] sm:$0xf] %v583
      %628 = vst [vmem:[#allocation8 + $0x2c] sm:$0xf] %v584
      %629 = vst [vmem:[#allocation8 + $0x30] sm:$0xf] %v585
      %630 = vst [vmem:[#allocation8 + $0x34] sm:$0xf] %v586
      %631 = vst [vmem:[#allocation8 + $0x38] sm:$0xf] %v587
      %632 = vst [vmem:[#allocation8 + $0x3c] sm:$0xf] %v588
      %633 = vst [vmem:[#allocation8 + $0x40] sm:$0xf] %v589
      %634 = vst [vmem:[#allocation8 + $0x44] sm:$0xf] %v590
      %635 = vst [vmem:[#allocation8 + $0x48] sm:$0xf] %v591
      %636 = vst [vmem:[#allocation8 + $0x4c] sm:$0xf] %v592
      %637 = vst [vmem:[#allocation8 + $0x50] sm:$0xf] %v593
      %638 = vst [vmem:[#allocation8 + $0x54] sm:$0xf] %v594
    $region29: #{tpu_custom_call.1} parent=1 // pred_fallthru
      _
    // Predicated region
    $region30: #{tpu_custom_call.1} parent=1 // pred_check
      _
    $region31: #{tpu_custom_call.1} parent=1 // pred_check_branch
      %640 = sbr.rel (0) target = $region33
    $region32: #{tpu_custom_call.1} parent=1 // pred_region
      %s642 = ssub.s32 1408, 1408
      %643 = vsyncadd [#allocation5], %s642
      %s644 = sshll.u32 [#allocation8], 4
      %s645 = int_to_ptr.vmem [resolvable:$true] %s644
      %650 = dma.vmem_to_hbm [thread:$0]  %s645, 1408, %s3, [#allocation5], 64, 64, 4
    $region33: #{tpu_custom_call.1} parent=1 // pred_fallthru
      _
    // Predicated region
    $region34: #{tpu_custom_call.1} parent=1 // pred_check
      _
    $region35: #{tpu_custom_call.1} parent=1 // pred_check_branch
      %652 = sbr.rel (0) target = $region37
    $region36: #{tpu_custom_call.1} parent=1 // pred_region
      %653 = dma.done [#allocation5], 1408
    $region37: #{tpu_custom_call.1} parent=1 // pred_fallthru
      _
    %654 = vsyncpa [#allocation4], 1
    %655 = vsyncpa [#allocation7], 1
    %656 = vsyncpa [#allocation5], 1

</llo_original>
